<compile_context>
chip_gen: v7x
topology: tpu7x:2x2x1
jax: 0.10.0
libtpu: 0.0.40
codegen_flags: <defaults>
</compile_context>

<pallas_src>
import jax
import jax.numpy as jnp
from jax.experimental import pallas as pl
from jax.experimental.pallas import tpu as pltpu
import numpy as np

C_IN = 48
C_OUT = 32
KSIZE = 5
STRIDE = 4
BN_EPS = 1e-5
K_DIM = C_IN * KSIZE          # 240
N_OUT = 3 * C_OUT             # 96 (three identical branches, concat fused)
TL_MAX = 2048                 # max lane-tile; keeps per-step VMEM ~6 MiB


def conv_bn_relu_kernel(p_ref, w_ref, b_ref, o_ref):
    # p_ref: (1, 240, TL)  patches (contraction index = c*K + k)
    # w_ref: (96, 240)     BN-folded, concat-tiled weights (resident)
    # b_ref: (96, 1)       BN-folded bias column (resident)
    # o_ref: (1, 96, TL)   output tile in native channel-major layout
    acc = jnp.dot(w_ref[...], p_ref[0],
                  preferred_element_type=jnp.float32)        # MXU matmul
    o_ref[0] = jnp.maximum(acc + b_ref[...], 0.0)            # bias + ReLU


@jax.jit
def multiscale_cnn_module2(x, conv_w, bn_gamma, bn_beta, bn_mean, bn_var):
    """x: (N, 48, L) float32.  Returns (N, 96, L_out) float32 (eval mode)."""
    N, Cin, L = x.shape
    if Cin != C_IN:
        raise ValueError(f"expected {C_IN} input channels, got {Cin}")
    if L < KSIZE:
        raise ValueError(f"sequence length {L} < kernel size {KSIZE}")
    L_out = (L - KSIZE) // STRIDE + 1

    # ---- glue: im2col in channel-major orientation (strided slices + stack) --
    x_f = x.astype(jnp.float32)
    taps = [
        jax.lax.slice(x_f, (0, 0, k),
                      (N, C_IN, k + (L_out - 1) * STRIDE + 1),
                      (1, 1, STRIDE))                      # (N, 48, L_out)
        for k in range(KSIZE)
    ]
    patches_t = jnp.stack(taps, axis=2).reshape(N, K_DIM, L_out)   # (N, 240, L_out)

    # conv_w: (32, 48, 5) -> (32, 240); same (c, k) contraction ordering.
    w_mat = conv_w.reshape(C_OUT, K_DIM).astype(jnp.float32)
    # fold BatchNorm (eval mode) scale into the weights; keep bias separate.
    scale = bn_gamma / jnp.sqrt(bn_var + BN_EPS)            # (32,)
    bias = bn_beta - bn_mean * scale                        # (32,)
    w_scaled = w_mat * scale[:, None]                       # (32, 240)
    # fuse the 3-way concat: identical branches -> tile rows to 96 channels.
    w_full = jnp.tile(w_scaled, (3, 1)).astype(jnp.float32)            # (96, 240)
    b_full = jnp.tile(bias[:, None], (3, 1)).astype(jnp.float32)       # (96, 1)

    # ---- tiling: lane-dense blocks along L_out, batch dim as second grid axis
    TL = L_out if L_out <= TL_MAX else TL_MAX
    grid = (N, pl.cdiv(L_out, TL))

    cost = pl.CostEstimate(
        flops=2 * N * N_OUT * K_DIM * L_out,
        transcendentals=0,
        bytes_accessed=(N * K_DIM * L_out * 4          # patches read
                        + K_DIM * N_OUT * 4            # weights
                        + N_OUT * 4                    # bias
                        + N * N_OUT * L_out * 4),      # output write
    )

    out = pl.pallas_call(
        conv_bn_relu_kernel,
        out_shape=jax.ShapeDtypeStruct((N, N_OUT, L_out), jnp.float32),
        grid=grid,
        in_specs=[
            pl.BlockSpec((1, K_DIM, TL), lambda n, i: (n, 0, i)),   # patches tile
            pl.BlockSpec((N_OUT, K_DIM), lambda n, i: (0, 0)),      # weights resident
            pl.BlockSpec((N_OUT, 1), lambda n, i: (0, 0)),          # bias resident
        ],
        out_specs=pl.BlockSpec((1, N_OUT, TL), lambda n, i: (n, 0, i)),
        compiler_params=pltpu.CompilerParams(
            dimension_semantics=("parallel", "parallel")),
        cost_estimate=cost,
    )(patches_t, w_full, b_full)

    # Output already in (N, 96, L_out) channel-major layout: no post-transpose.
    return out


def reference(x, conv_w, bn_gamma, bn_beta, bn_mean, bn_var):
    """Pure-JAX reference (eval mode) for checking."""
    y = jax.lax.conv_general_dilated(
        x, conv_w, window_strides=(STRIDE,), padding="VALID",
        dimension_numbers=("NCH", "OIH", "NCH"))
    scale = bn_gamma / jnp.sqrt(bn_var + BN_EPS)
    bias = bn_beta - bn_mean * scale
    y = y * scale[None, :, None] + bias[None, :, None]
    y = jnp.maximum(y, 0.0)
    return jnp.concatenate([y, y, y], axis=1)


if __name__ == "__main__":
    key = jax.random.PRNGKey(0)
    k_x, k_w, k_g, k_b, k_m, k_v, k_x2 = jax.random.split(key, 7)

    # deterministic synthetic parameters (module __init__ shapes)
    conv_w = jax.random.normal(k_w, (C_OUT, C_IN, KSIZE), dtype=jnp.float32) * 0.1
    bn_gamma = 1.0 + 0.1 * jax.random.normal(k_g, (C_OUT,), dtype=jnp.float32)
    bn_beta = 0.1 * jax.random.normal(k_b, (C_OUT,), dtype=jnp.float32)
    bn_mean = 0.1 * jax.random.normal(k_m, (C_OUT,), dtype=jnp.float32)
    bn_var = jnp.abs(jax.random.normal(k_v, (C_OUT,), dtype=jnp.float32)) + 0.5

    # case 1: small shape (single small block per batch)
    N, L = 2, 37                       # L_out = (37 - 5)//4 + 1 = 9
    x = jax.random.normal(k_x, (N, C_IN, L), dtype=jnp.float32)
    out = multiscale_cnn_module2(x, conv_w, bn_gamma, bn_beta, bn_mean, bn_var)
    out = jax.block_until_ready(out)
    ref = reference(x, conv_w, bn_gamma, bn_beta, bn_mean, bn_var)
    assert out.shape == (N, 3 * C_OUT, (L - KSIZE) // STRIDE + 1), out.shape
    np.testing.assert_allclose(np.asarray(out), np.asarray(ref),
                               rtol=1e-4, atol=1e-4)

    # case 2: larger shape (multi-step grid over batch, lane-dense blocks)
    N2, L2 = 4, 2053                   # L_out = 513
    x2 = jax.random.normal(k_x2, (N2, C_IN, L2), dtype=jnp.float32)
    out2 = multiscale_cnn_module2(x2, conv_w, bn_gamma, bn_beta, bn_mean, bn_var)
    out2 = jax.block_until_ready(out2)
    ref2 = reference(x2, conv_w, bn_gamma, bn_beta, bn_mean, bn_var)
    assert out2.shape == (N2, 3 * C_OUT, (L2 - KSIZE) // STRIDE + 1), out2.shape
    np.testing.assert_allclose(np.asarray(out2), np.asarray(ref2),
                               rtol=1e-4, atol=1e-4)

    print("KERNEL_OK")
</pallas_src>

<mosaic_0001>
module attributes {stable_mosaic.version = 11 : i64} {
  func.func @conv_bn_relu_kernel(%arg0: i32, %arg1: i32, %arg2: memref<1x240x9xf32, #tpu.memory_space<vmem>>, %arg3: memref<96x240xf32, #tpu.memory_space<vmem>>, %arg4: memref<96x1xf32, #tpu.memory_space<vmem>>, %arg5: memref<1x96x9xf32, #tpu.memory_space<vmem>>) attributes {dimension_semantics = [#tpu.dimension_semantics<parallel>, #tpu.dimension_semantics<parallel>], iteration_bounds = array<i64: 2, 1>, scalar_prefetch = 0 : i64, scratch_operands = 0 : i64, tpu.core_type = #tpu.core_type<tc>, window_params = [{transform_indices = @transform_0, window_bounds = array<i64: 1, 240, 9>}, {pipeline_mode = #tpu.pipeline_mode<synchronous>, transform_indices = @transform_1, window_bounds = array<i64: 96, 240>}, {pipeline_mode = #tpu.pipeline_mode<synchronous>, transform_indices = @transform_2, window_bounds = array<i64: 96, 1>}, {transform_indices = @transform_3, window_bounds = array<i64: 1, 96, 9>}]} {
    %c0 = arith.constant 0 : index
    %c0_0 = arith.constant 0 : index
    %0 = vector.load %arg3[%c0, %c0_0] : memref<96x240xf32, #tpu.memory_space<vmem>>, vector<96x240xf32>
    %c0_1 = arith.constant 0 : index
    %c0_2 = arith.constant 0 : index
    %c0_3 = arith.constant 0 : index
    %1 = vector.load %arg2[%c0_1, %c0_2, %c0_3] : memref<1x240x9xf32, #tpu.memory_space<vmem>>, vector<1x240x9xf32>
    %2 = vector.shape_cast %1 : vector<1x240x9xf32> to vector<240x9xf32>
    %cst = arith.constant dense<0.000000e+00> : vector<96x9xf32>
    %3 = tpu.matmul %0, %2, %cst {dimension_numbers = #tpu.dot_dimension_numbers<[1], [0], [0], [1], [0, 0, 1, 1], [], []>} : vector<96x240xf32>, vector<240x9xf32>, vector<96x9xf32> -> vector<96x9xf32>
    %c0_4 = arith.constant 0 : index
    %c0_5 = arith.constant 0 : index
    %4 = vector.load %arg4[%c0_4, %c0_5] : memref<96x1xf32, #tpu.memory_space<vmem>>, vector<96x1xf32>
    %5 = vector.broadcast %4 : vector<96x1xf32> to vector<96x9xf32>
    %6 = arith.addf %3, %5 : vector<96x9xf32>
    %cst_6 = arith.constant 0.000000e+00 : f32
    %7 = vector.broadcast %cst_6 : f32 to vector<96x9xf32>
    %8 = arith.maximumf %6, %7 : vector<96x9xf32>
    %c0_7 = arith.constant 0 : index
    %c0_8 = arith.constant 0 : index
    %c0_9 = arith.constant 0 : index
    %9 = vector.load %arg5[%c0_7, %c0_8, %c0_9] : memref<1x96x9xf32, #tpu.memory_space<vmem>>, vector<1x96x9xf32>
    %10 = vector.shape_cast %9 : vector<1x96x9xf32> to vector<96x9xf32>
    %11 = vector.shape_cast %8 : vector<96x9xf32> to vector<1x96x9xf32>
    tpu.vector_store %arg5[%c0_7, %c0_8, %c0_9], %11 {strides = array<i32>} : memref<1x96x9xf32, #tpu.memory_space<vmem>>, vector<1x96x9xf32>,
    return
  }
  func.func @transform_0(%arg0: i32, %arg1: i32) -> (i32, i32, i32) {
    %c0_i32 = arith.constant 0 : i32
    %c0_i32_0 = arith.constant 0 : i32
    return %arg0, %c0_i32, %arg1 : i32, i32, i32
  }
  func.func @transform_1(%arg0: i32, %arg1: i32) -> (i32, i32) {
    %c0_i32 = arith.constant 0 : i32
    %c0_i32_0 = arith.constant 0 : i32
    %c0_i32_1 = arith.constant 0 : i32
    return %c0_i32, %c0_i32_0 : i32, i32
  }
  func.func @transform_2(%arg0: i32, %arg1: i32) -> (i32, i32) {
    %c0_i32 = arith.constant 0 : i32
    %c0_i32_0 = arith.constant 0 : i32
    %c0_i32_1 = arith.constant 0 : i32
    return %c0_i32, %c0_i32_0 : i32, i32
  }
  func.func @transform_3(%arg0: i32, %arg1: i32) -> (i32, i32, i32) {
    %c0_i32 = arith.constant 0 : i32
    %c0_i32_0 = arith.constant 0 : i32
    return %arg0, %c0_i32, %arg1 : i32, i32, i32
  }
}

</mosaic_0001>

<llo_original>
// kernel: multiscale_cnn_module2.1
$region0: #{multiscale_cnn_module2.1}
  #allocation0 [shape = 'u32[]', space=smem, size = 0x4, offset = 0x4, fixed_abs, tag = 'smem constant byte address 0x4 - core index']
  #allocation1 [shape = 'u32[144,128]{1,0:T(1,128)}', space=vmem, size = 0x12000, scoped, tag = 'internal scratch']
  %s0 = inlined_call_operand.vmem [shape: f32[2,240,9], index: 0, kind: input, shape index: {}]
  %s1 = inlined_call_operand.vmem [shape: f32[96,240], index: 1, kind: input, shape index: {}]
  %s2 = inlined_call_operand.vmem [shape: f32[96,1], index: 2, kind: input, shape index: {}]
  %s3 = inlined_call_operand.vmem [shape: f32[2,96,9], index: 3, kind: output, shape index: {}]
  %s4 = sld [smem:[#allocation0]]
  $region45: #{multiscale_cnn_module2.1} parent=0
    _
  %s6 = ssub.s32 1, %s4
  %s7 = scalar_select 0, %s6, %s4
  loop: start=0, step=1, limit=4
  $region2: #{multiscale_cnn_module2.1} parent=0 // loop_pre_header
    _
  $region3: #{multiscale_cnn_module2.1} parent=0 // loop_header
    %s9 = sphi 0, %s13
    %p10 = scmp.ge.s32.totalorder %s9, 4
    %s16 = sphi 0, %s28
    %s17 = sphi 0, %s24
    %s18 = sphi 0, %s16
    %s19 = sphi 0, %s17
    %s20 = sphi 0, %s18
    %s21 = sphi 0, %s19
    %s33 = sphi 0, %s35
    %s36 = sphi 0, %s33
    %s37 = sphi 0, %s36
    %s53 = sphi 0, %s37
    %s57 = sphi 0, %s57
    %s59 = sphi 0, %s57
    %s60 = sphi 0, %s59
    %s74 = sphi 0, %s60
    %s78 = sphi 0, %s78
    %s80 = sphi 0, %s78
    %s81 = sphi 0, %s80
    %s95 = sphi 0, %s81
    %s103 = sphi 0, %s105
    %s106 = sphi 0, %s103
    %s107 = sphi 0, %s106
    %s123 = sphi 0, %s107
  $region4: #{multiscale_cnn_module2.1} parent=0 // loop_header_branch
    %12 = sbr.rel (%p10) target = $region8
  $region5: #{multiscale_cnn_module2.1} parent=0 // loop_body
    %s14 = ssub.s32 %s9, 1
    %s15 = ssub.s32 %s9, 2
    %s22 = sadd.s32 1, %s17
    %p23 = scmp.ge.s32.totalorder %s22, 1
    %s24 = scalar_select %p23, 0, %s22
    %s25 = sadd.s32 1, %s16
    %s26 = scalar_select %p23, %s25, %s16
    %p27 = scmp.ge.s32.totalorder %s26, 2
    %s28 = scalar_select %p27, 0, %s26
    %s29 = ssub.s32 %s16, %s28
    %s30 = ssub.s32 %s17, %s24
    %s31 = sor.u32 %s29, %s30
    %p32 = scmp.eq.s32.totalorder %s31, 0
    %s34 = sadd.s32 %s33, 1
    %s35 = scalar_select %p32, %s33, %s34
    %p38 = pneg %p32
    %p39 = scmp.eq.s32.totalorder %s9, 1
    %p40 = por %p38, %p39
    %p41 = scmp.ne.s32.totalorder %s33, %s36
    %p42 = scmp.eq.s32.totalorder %s9, 0
    %p43 = por %p41, %p42
    %p44 = scmp.ne.s32.totalorder %s33, %s36
    %p45 = scmp.eq.s32.totalorder %s14, 1
    %p46 = por %p44, %p45
    %p47 = scmp.ne.s32.totalorder %s36, %s37
    %p48 = scmp.eq.s32.totalorder %s14, 0
    %p49 = por %p47, %p48
    %p50 = scmp.ne.s32.totalorder %s36, %s37
    %p51 = scmp.eq.s32.totalorder %s15, 1
    %p52 = por %p50, %p51
    %p54 = scmp.ne.s32.totalorder %s37, %s53
    %p55 = scmp.eq.s32.totalorder %s15, 0
    %p56 = por %p54, %p55
    %s58 = sadd.s32 %s57, 1
    %p61 = scmp.eq.s32.totalorder %s9, 1
    %p62 = scmp.ne.s32.totalorder %s57, %s59
    %p63 = scmp.eq.s32.totalorder %s9, 0
    %p64 = por %p62, %p63
    %p65 = scmp.ne.s32.totalorder %s57, %s59
    %p66 = scmp.eq.s32.totalorder %s14, 1
    %p67 = por %p65, %p66
    %p68 = scmp.ne.s32.totalorder %s59, %s60
    %p69 = scmp.eq.s32.totalorder %s14, 0
    %p70 = por %p68, %p69
    %p71 = scmp.ne.s32.totalorder %s59, %s60
    %p72 = scmp.eq.s32.totalorder %s15, 1
    %p73 = por %p71, %p72
    %p75 = scmp.ne.s32.totalorder %s60, %s74
    %p76 = scmp.eq.s32.totalorder %s15, 0
    %p77 = por %p75, %p76
    %s79 = sadd.s32 %s78, 1
    %p82 = scmp.eq.s32.totalorder %s9, 1
    %p83 = scmp.ne.s32.totalorder %s78, %s80
    %p84 = scmp.eq.s32.totalorder %s9, 0
    %p85 = por %p83, %p84
    %p86 = scmp.ne.s32.totalorder %s78, %s80
    %p87 = scmp.eq.s32.totalorder %s14, 1
    %p88 = por %p86, %p87
    %p89 = scmp.ne.s32.totalorder %s80, %s81
    %p90 = scmp.eq.s32.totalorder %s14, 0
    %p91 = por %p89, %p90
    %p92 = scmp.ne.s32.totalorder %s80, %s81
    %p93 = scmp.eq.s32.totalorder %s15, 1
    %p94 = por %p92, %p93
    %p96 = scmp.ne.s32.totalorder %s81, %s95
    %p97 = scmp.eq.s32.totalorder %s15, 0
    %p98 = por %p96, %p97
    %s99 = ssub.s32 %s16, %s28
    %s100 = ssub.s32 %s17, %s24
    %s101 = sor.u32 %s99, %s100
    %p102 = scmp.eq.s32.totalorder %s101, 0
    %s104 = sadd.s32 %s103, 1
    %s105 = scalar_select %p102, %s103, %s104
    %p108 = pneg %p102
    %p109 = scmp.eq.s32.totalorder %s9, 1
    %p110 = por %p108, %p109
    %p111 = scmp.ne.s32.totalorder %s103, %s106
    %p112 = scmp.eq.s32.totalorder %s9, 0
    %p113 = por %p111, %p112
    %p114 = scmp.ne.s32.totalorder %s103, %s106
    %p115 = scmp.eq.s32.totalorder %s14, 1
    %p116 = por %p114, %p115
    %p117 = scmp.ne.s32.totalorder %s106, %s107
    %p118 = scmp.eq.s32.totalorder %s14, 0
    %p119 = por %p117, %p118
    %p120 = scmp.ne.s32.totalorder %s106, %s107
    %p121 = scmp.eq.s32.totalorder %s15, 1
    %p122 = por %p120, %p121
    %p124 = scmp.ne.s32.totalorder %s107, %s123
    %p125 = scmp.eq.s32.totalorder %s15, 0
    %p126 = por %p124, %p125
    %p127 = scmp.le.s32.totalorder 1, %s9
    %p128 = scmp.lt.s32.totalorder %s9, 3
    %p129 = pnand %p127, %p128
    %p130 = pneg %p129
    // Predicated region
    $region9: #{multiscale_cnn_module2.1} parent=5 // pred_check
      _
    $region10: #{multiscale_cnn_module2.1} parent=5 // pred_check_branch
      %132 = sbr.rel (%p129) target = $region12
    $region11: #{multiscale_cnn_module2.1} parent=5 // pred_region
      %s133 = ssub.s32 %s9, 1
      // Predicated region
      $region13: #{multiscale_cnn_module2.1} parent=11 // pred_check
        %p134 = pneg %p70
      $region14: #{multiscale_cnn_module2.1} parent=11 // pred_check_branch
        %136 = sbr.rel (%p134) target = $region16
      $region15: #{multiscale_cnn_module2.1} parent=11 // pred_region
        _
      $region16: #{multiscale_cnn_module2.1} parent=11 // pred_fallthru
        _
      // Predicated region
      $region17: #{multiscale_cnn_module2.1} parent=11 // pred_check
        %p137 = pneg %p91
      $region18: #{multiscale_cnn_module2.1} parent=11 // pred_check_branch
        %139 = sbr.rel (%p137) target = $region20
      $region19: #{multiscale_cnn_module2.1} parent=11 // pred_region
        _
      $region20: #{multiscale_cnn_module2.1} parent=11 // pred_fallthru
        _
    $region12: #{multiscale_cnn_module2.1} parent=5 // pred_fallthru
      _
    %p140 = scmp.lt.s32.totalorder %s9, 2
    // Predicated region
    $region21: #{multiscale_cnn_module2.1} parent=5 // pred_check
      %p141 = pneg %p140
    $region22: #{multiscale_cnn_module2.1} parent=5 // pred_check_branch
      %143 = sbr.rel (%p141) target = $region24
    $region23: #{multiscale_cnn_module2.1} parent=5 // pred_region
      // Predicated region
      $region25: #{multiscale_cnn_module2.1} parent=23 // pred_check
        %p144 = pneg %p43
      $region26: #{multiscale_cnn_module2.1} parent=23 // pred_check_branch
        %146 = sbr.rel (%p144) target = $region28
      $region27: #{multiscale_cnn_module2.1} parent=23 // pred_region
        %p147 = scmp.lt.s32.totalorder %s16, 1
        %s148 = scalar_select %p147, %s16, 1
        %p149 = scmp.lt.s32.totalorder %s17, 0
        %s150 = scalar_select %p149, %s17, 0
        %s151 = smul.addr %s148, 30
        %s152 = sadd.s32 %s150, %s151
        %s153 = smul.addr %s152, 8
        %s154 = scalar_lea.vmem %s0, %s153
      $region28: #{multiscale_cnn_module2.1} parent=23 // pred_fallthru
        _
    $region24: #{multiscale_cnn_module2.1} parent=5 // pred_fallthru
      _
    %p155 = scmp.le.s32.totalorder 1, %s9
    %p156 = scmp.lt.s32.totalorder %s9, 3
    %p157 = pnand %p155, %p156
    %p158 = pneg %p157
    // Predicated region
    $region29: #{multiscale_cnn_module2.1} parent=5 // pred_check
      _
    $region30: #{multiscale_cnn_module2.1} parent=5 // pred_check_branch
      %160 = sbr.rel (%p157) target = $region32
    $region31: #{multiscale_cnn_module2.1} parent=5 // pred_region
      %s161 = ssub.s32 %s9, 1
      %p162 = scmp.lt.s32.totalorder %s18, 1
      %s163 = scalar_select %p162, %s18, 1
      %p164 = scmp.lt.s32.totalorder %s19, 0
      %s165 = scalar_select %p164, %s19, 0
      %s166 = smul.addr %s163, 30
      %s167 = sadd.s32 %s165, %s166
      %s168 = smul.addr %s167, 8
      %s169 = scalar_lea.vmem %s0, %s168
      %p170 = pneg %p49
      %p171 = pneg %p46
      %p172 = pneg %p70
      %p173 = pneg %p67
      %p174 = pneg %p91
      %p175 = pneg %p88
      %p176 = pneg %p119
      %p177 = pneg %p116
      %p178 = scmp.lt.s32.totalorder %s18, 1
      %s179 = scalar_select %p178, %s18, 1
      %p180 = scmp.lt.s32.totalorder %s19, 0
      %s181 = scalar_select %p180, %s19, 0
      %s182 = smul.addr %s179, 12
      %s183 = sadd.s32 %s181, %s182
      %s184 = smul.addr %s183, 8
      %s185 = scalar_lea.vmem %s3, %s184
      %p186 = scmp.lt.s32.totalorder %s18, 1
      %s187 = scalar_select %p186, %s18, 1
      %p188 = scmp.lt.s32.totalorder %s19, 0
      %s189 = scalar_select %p188, %s19, 0
      %s190 = smul.addr %s187, 30
      %s191 = sadd.s32 %s189, %s190
      %s192 = smul.addr %s191, 8
      %s193 = scalar_lea.vmem %s0, %s192
      %p194 = scmp.lt.s32.totalorder %s18, 1
      %s195 = scalar_select %p194, %s18, 1
      %p196 = scmp.lt.s32.totalorder %s19, 0
      %s197 = scalar_select %p196, %s19, 0
      %s198 = smul.addr %s195, 12
      %s199 = sadd.s32 %s197, %s198
      %s200 = smul.addr %s199, 8
      %s201 = scalar_lea.vmem %s3, %s200
      %v202 = vld [vmem:[%s1] sm:$0xff]
      %v203 = vld [vmem:[%s1 + $0x8] sm:$0xff]
      %v204 = vld [vmem:[%s1 + $0x10] sm:$0xff]
      %v205 = vld [vmem:[%s1 + $0x18] sm:$0xff]
      %v206 = vld [vmem:[%s1 + $0x20] sm:$0xff]
      %v207 = vld [vmem:[%s1 + $0x28] sm:$0xff]
      %v208 = vld [vmem:[%s1 + $0x30] sm:$0xff]
      %v209 = vld [vmem:[%s1 + $0x38] sm:$0xff]
      %v210 = vld [vmem:[%s1 + $0x40] sm:$0xff]
      %v211 = vld [vmem:[%s1 + $0x48] sm:$0xff]
      %v212 = vld [vmem:[%s1 + $0x50] sm:$0xff]
      %v213 = vld [vmem:[%s1 + $0x58] sm:$0xff]
      %v214 = vld [vmem:[%s1 + $0x60] sm:$0xff]
      %v215 = vld [vmem:[%s1 + $0x68] sm:$0xff]
      %v216 = vld [vmem:[%s1 + $0x70] sm:$0xff]
      %v217 = vld [vmem:[%s1 + $0x78] sm:$0xff]
      %v218 = vld [vmem:[%s1 + $0x80] sm:$0xff]
      %v219 = vld [vmem:[%s1 + $0x88] sm:$0xff]
      %v220 = vld [vmem:[%s1 + $0x90] sm:$0xff]
      %v221 = vld [vmem:[%s1 + $0x98] sm:$0xff]
      %v222 = vld [vmem:[%s1 + $0xa0] sm:$0xff]
      %v223 = vld [vmem:[%s1 + $0xa8] sm:$0xff]
      %v224 = vld [vmem:[%s1 + $0xb0] sm:$0xff]
      %v225 = vld [vmem:[%s1 + $0xb8] sm:$0xff]
      %v226 = vld [vmem:[%s193] sm:$0xff]
      %v227 = vld [vmem:[%s193 + $0x8] sm:$0xff]
      %v228 = vld [vmem:[%s193 + $0x10] sm:$0xff]
      %v229 = vld [vmem:[%s193 + $0x18] sm:$0xff]
      %v230 = vld [vmem:[%s193 + $0x20] sm:$0xff]
      %v231 = vld [vmem:[%s193 + $0x28] sm:$0xff]
      %v232 = vld [vmem:[%s193 + $0x30] sm:$0xff]
      %v233 = vld [vmem:[%s193 + $0x38] sm:$0xff]
      %v234 = vld [vmem:[%s193 + $0x40] sm:$0xff]
      %v235 = vld [vmem:[%s193 + $0x48] sm:$0xff]
      %v236 = vld [vmem:[%s193 + $0x50] sm:$0xff]
      %v237 = vld [vmem:[%s193 + $0x58] sm:$0xff]
      %v238 = vld [vmem:[%s193 + $0x60] sm:$0xff]
      %v239 = vld [vmem:[%s193 + $0x68] sm:$0xff]
      %v240 = vld [vmem:[%s193 + $0x70] sm:$0xff]
      %v241 = vld [vmem:[%s193 + $0x78] sm:$0xff]
      %v242 = vld [vmem:[%s193 + $0x80] sm:$0xff]
      %v243 = vld [vmem:[%s193 + $0x88] sm:$0xff]
      %v244 = vld [vmem:[%s193 + $0x90] sm:$0xff]
      %v245 = vld [vmem:[%s193 + $0x98] sm:$0xff]
      %v246 = vld [vmem:[%s193 + $0xa0] sm:$0xff]
      %v247 = vld [vmem:[%s193 + $0xa8] sm:$0xff]
      %v248 = vld [vmem:[%s193 + $0xb0] sm:$0xff]
      %v249 = vld [vmem:[%s193 + $0xb8] sm:$0xff]
      %v250 = vld [vmem:[%s193 + $0xc0] sm:$0xff]
      %v251 = vld [vmem:[%s193 + $0xc8] sm:$0xff]
      %v252 = vld [vmem:[%s193 + $0xd0] sm:$0xff]
      %v253 = vld [vmem:[%s193 + $0xd8] sm:$0xff]
      %v254 = vld [vmem:[%s193 + $0xe0] sm:$0xff]
      %v255 = vld [vmem:[%s193 + $0xe8] sm:$0xff]
      %v256 = vld [vmem:[%s2] sm:$0xff]
      %v257 = vld [vmem:[%s2 + $0x8] sm:$0xff]
      %v258 = vld [vmem:[%s2 + $0x10] sm:$0xff]
      %v259 = vld [vmem:[%s2 + $0x18] sm:$0xff]
      %v260 = vld [vmem:[%s2 + $0x20] sm:$0xff]
      %v261 = vld [vmem:[%s2 + $0x28] sm:$0xff]
      %v262 = vld [vmem:[%s2 + $0x30] sm:$0xff]
      %v263 = vld [vmem:[%s2 + $0x38] sm:$0xff]
      %v264 = vld [vmem:[%s2 + $0x40] sm:$0xff]
      %v265 = vld [vmem:[%s2 + $0x48] sm:$0xff]
      %v266 = vld [vmem:[%s2 + $0x50] sm:$0xff]
      %v267 = vld [vmem:[%s2 + $0x58] sm:$0xff]
      %269 = vset.pattern.permute.xlu0 0
      %270 = vperm.xlu0 %269, %v256
      %v271 = vpop.permute.xlu0 %270
      %274 = vset.pattern.permute.xlu0 0
      %275 = vperm.xlu0 %274, %v257
      %v276 = vpop.permute.xlu0 %275
      %279 = vset.pattern.permute.xlu0 0
      %280 = vperm.xlu0 %279, %v258
      %v281 = vpop.permute.xlu0 %280
      %284 = vset.pattern.permute.xlu0 0
      %285 = vperm.xlu0 %284, %v259
      %v286 = vpop.permute.xlu0 %285
      %289 = vset.pattern.permute.xlu0 0
      %290 = vperm.xlu0 %289, %v260
      %v291 = vpop.permute.xlu0 %290
      %294 = vset.pattern.permute.xlu0 0
      %295 = vperm.xlu0 %294, %v261
      %v296 = vpop.permute.xlu0 %295
      %299 = vset.pattern.permute.xlu0 0
      %300 = vperm.xlu0 %299, %v262
      %v301 = vpop.permute.xlu0 %300
      %304 = vset.pattern.permute.xlu0 0
      %305 = vperm.xlu0 %304, %v263
      %v306 = vpop.permute.xlu0 %305
      %309 = vset.pattern.permute.xlu0 0
      %310 = vperm.xlu0 %309, %v264
      %v311 = vpop.permute.xlu0 %310
      %314 = vset.pattern.permute.xlu0 0
      %315 = vperm.xlu0 %314, %v265
      %v316 = vpop.permute.xlu0 %315
      %319 = vset.pattern.permute.xlu0 0
      %320 = vperm.xlu0 %319, %v266
      %v321 = vpop.permute.xlu0 %320
      %324 = vset.pattern.permute.xlu0 0
      %325 = vperm.xlu0 %324, %v267
      %v326 = vpop.permute.xlu0 %325
      %vm328 = vcmask 916480
      %v330 = vsel %vm328, %v203, 0
      %v333 = vsel %vm328, %v205, 0
      %v336 = vsel %vm328, %v207, 0
      %v339 = vsel %vm328, %v209, 0
      %v342 = vsel %vm328, %v211, 0
      %v345 = vsel %vm328, %v213, 0
      %v348 = vsel %vm328, %v215, 0
      %v351 = vsel %vm328, %v217, 0
      %v354 = vsel %vm328, %v219, 0
      %v357 = vsel %vm328, %v221, 0
      %v360 = vsel %vm328, %v223, 0
      %v363 = vsel %vm328, %v225, 0
      %365 = vmatprep.subr.mxu0 0.0
      %366 = vmatpush1.msra.mxu0 %v226
      %367 = vmatprep.subr.mxu0 0.0
      %368 = vmatpush1.msra.mxu0 %v227
      %369 = vmatprep.subr.mxu0 0.0
      %370 = vmatpush1.msra.mxu0 %v228
      %371 = vmatprep.subr.mxu0 0.0
      %372 = vmatpush1.msra.mxu0 %v229
      %373 = vmatprep.subr.mxu0 0.0
      %374 = vmatpush1.msra.mxu0 %v230
      %375 = vmatprep.subr.mxu0 0.0
      %376 = vmatpush1.msra.mxu0 %v231
      %377 = vmatprep.subr.mxu0 0.0
      %378 = vmatpush1.msra.mxu0 %v232
      %379 = vmatprep.subr.mxu0 0.0
      %380 = vmatpush1.msra.mxu0 %v233
      %381 = vmatprep.subr.mxu0 0.0
      %382 = vmatpush1.msra.mxu0 %v234
      %383 = vmatprep.subr.mxu0 0.0
      %384 = vmatpush1.msra.mxu0 %v235
      %385 = vmatprep.subr.mxu0 0.0
      %386 = vmatpush1.msra.mxu0 %v236
      %387 = vmatprep.subr.mxu0 0.0
      %388 = vmatpush1.msra.mxu0 %v237
      %389 = vmatprep.subr.mxu0 0.0
      %390 = vmatpush1.msra.mxu0 %v238
      %391 = vmatprep.subr.mxu0 0.0
      %392 = vmatpush1.msra.mxu0 %v239
      %393 = vmatprep.subr.mxu0 0.0
      %394 = vmatpush1.msra.mxu0 %v240
      %395 = vmatprep.subr.mxu0 0.0
      %396 = vmatpush1.msra.mxu0 %v241
      %397 = vmatprep.subr.mxu0 0.0
      %398 = vmatpush1.msra.mxu0 %v242
      %399 = vmatprep.subr.mxu0 0.0
      %400 = vmatpush1.msra.mxu0 %v243
      %401 = vmatprep.subr.mxu0 0.0
      %402 = vmatpush1.msra.mxu0 %v244
      %403 = vmatprep.subr.mxu0 0.0
      %404 = vmatpush1.msra.mxu0 %v245
      %405 = vmatprep.subr.mxu0 0.0
      %406 = vmatpush1.msra.mxu0 %v246
      %407 = vmatprep.subr.mxu0 0.0
      %408 = vmatpush1.msra.mxu0 %v247
      %409 = vmatprep.subr.mxu0 0.0
      %410 = vmatpush1.msra.mxu0 %v248
      %411 = vmatprep.subr.mxu0 0.0
      %412 = vmatpush1.msra.mxu0 %v249
      %413 = vmatprep.subr.mxu0 0.0
      %414 = vmatpush1.msra.mxu0 %v250
      %415 = vmatprep.subr.mxu0 0.0
      %416 = vmatpush1.msra.mxu0 %v251
      %417 = vmatprep.subr.mxu0 0.0
      %418 = vmatpush1.msra.mxu0 %v252
      %419 = vmatprep.subr.mxu0 0.0
      %420 = vmatpush1.msra.mxu0 %v253
      %421 = vmatprep.subr.mxu0 0.0
      %422 = vmatpush1.msra.mxu0 %v254
      %423 = vmatprep.subr.mxu0 0.0
      %424 = vmatpush1.msra.mxu0 %v255
      %425 = vmatprep.subr.mxu0 0.0
      %426 = vmatpush1.msra.mxu0 0.0
      %427 = vmatprep.subr.mxu0 0.0
      %428 = vmatpush1.msra.mxu0 0.0
      %429 = vmatprep.mubr.f32.mxu0 %v330
      %430 = vmatmul.mubr.f32.gmra.mrb[0].mxu0 %v202
      %v431 = vpop.f32.mrb[0].mxu0
      %v432 = vadd.f32 %v271, %v431
      %v433 = vpop.f32.mrb[0].mxu0
      %434 = vmatprep.mubr.f32.mxu0 %v333
      %435 = vmatmul.mubr.f32.gmra.mrb[0].mxu0 %v204
      %v436 = vpop.f32.mrb[0].mxu0
      %v437 = vadd.f32 %v276, %v436
      %v438 = vpop.f32.mrb[0].mxu0
      %439 = vmatprep.mubr.f32.mxu0 %v336
      %440 = vmatmul.mubr.f32.gmra.mrb[0].mxu0 %v206
      %v441 = vpop.f32.mrb[0].mxu0
      %v442 = vadd.f32 %v281, %v441
      %v443 = vpop.f32.mrb[0].mxu0
      %444 = vmatprep.mubr.f32.mxu0 %v339
      %445 = vmatmul.mubr.f32.gmra.mrb[0].mxu0 %v208
      %v446 = vpop.f32.mrb[0].mxu0
      %v447 = vadd.f32 %v286, %v446
      %v448 = vpop.f32.mrb[0].mxu0
      %449 = vmatprep.mubr.f32.mxu0 %v342
      %450 = vmatmul.mubr.f32.gmra.mrb[0].mxu0 %v210
      %v451 = vpop.f32.mrb[0].mxu0
      %v452 = vadd.f32 %v291, %v451
      %v453 = vpop.f32.mrb[0].mxu0
      %454 = vmatprep.mubr.f32.mxu0 %v345
      %455 = vmatmul.mubr.f32.gmra.mrb[0].mxu0 %v212
      %v456 = vpop.f32.mrb[0].mxu0
      %v457 = vadd.f32 %v296, %v456
      %v458 = vpop.f32.mrb[0].mxu0
      %459 = vmatprep.mubr.f32.mxu0 %v348
      %460 = vmatmul.mubr.f32.gmra.mrb[0].mxu0 %v214
      %v461 = vpop.f32.mrb[0].mxu0
      %v462 = vadd.f32 %v301, %v461
      %v463 = vpop.f32.mrb[0].mxu0
      %464 = vmatprep.mubr.f32.mxu0 %v351
      %465 = vmatmul.mubr.f32.gmra.mrb[0].mxu0 %v216
      %v466 = vpop.f32.mrb[0].mxu0
      %v467 = vadd.f32 %v306, %v466
      %v468 = vpop.f32.mrb[0].mxu0
      %469 = vmatprep.mubr.f32.mxu0 %v354
      %470 = vmatmul.mubr.f32.gmra.mrb[0].mxu0 %v218
      %v471 = vpop.f32.mrb[0].mxu0
      %v472 = vadd.f32 %v311, %v471
      %v473 = vpop.f32.mrb[0].mxu0
      %474 = vmatprep.mubr.f32.mxu0 %v357
      %475 = vmatmul.mubr.f32.gmra.mrb[0].mxu0 %v220
      %v476 = vpop.f32.mrb[0].mxu0
      %v477 = vadd.f32 %v316, %v476
      %v478 = vpop.f32.mrb[0].mxu0
      %479 = vmatprep.mubr.f32.mxu0 %v360
      %480 = vmatmul.mubr.f32.gmra.mrb[0].mxu0 %v222
      %v481 = vpop.f32.mrb[0].mxu0
      %v482 = vadd.f32 %v321, %v481
      %v483 = vpop.f32.mrb[0].mxu0
      %484 = vmatprep.mubr.f32.mxu0 %v363
      %485 = vmatmul.mubr.f32.gmra.mrb[0].mxu0 %v224
      %v486 = vpop.f32.mrb[0].mxu0
      %v487 = vadd.f32 %v326, %v486
      %v488 = vpop.f32.mrb[0].mxu0
      %489 = vdwg.mxu0
      %v490 = vmax.f32 %v432, 0.0
      %v491 = vmax.f32 %v437, 0.0
      %v492 = vmax.f32 %v442, 0.0
      %v493 = vmax.f32 %v447, 0.0
      %v494 = vmax.f32 %v452, 0.0
      %v495 = vmax.f32 %v457, 0.0
      %v496 = vmax.f32 %v462, 0.0
      %v497 = vmax.f32 %v467, 0.0
      %v498 = vmax.f32 %v472, 0.0
      %v499 = vmax.f32 %v477, 0.0
      %v500 = vmax.f32 %v482, 0.0
      %v501 = vmax.f32 %v487, 0.0
      %vm502 = vcmask 72704
      %503 = vst.msk [vmem:[%s201] sm:$0xff] %vm502, %v490
      %504 = vst.msk [vmem:[%s201 + $0x8] sm:$0xff] %vm502, %v491
      %505 = vst.msk [vmem:[%s201 + $0x10] sm:$0xff] %vm502, %v492
      %506 = vst.msk [vmem:[%s201 + $0x18] sm:$0xff] %vm502, %v493
      %507 = vst.msk [vmem:[%s201 + $0x20] sm:$0xff] %vm502, %v494
      %508 = vst.msk [vmem:[%s201 + $0x28] sm:$0xff] %vm502, %v495
      %509 = vst.msk [vmem:[%s201 + $0x30] sm:$0xff] %vm502, %v496
      %510 = vst.msk [vmem:[%s201 + $0x38] sm:$0xff] %vm502, %v497
      %511 = vst.msk [vmem:[%s201 + $0x40] sm:$0xff] %vm502, %v498
      %512 = vst.msk [vmem:[%s201 + $0x48] sm:$0xff] %vm502, %v499
      %513 = vst.msk [vmem:[%s201 + $0x50] sm:$0xff] %vm502, %v500
      %514 = vst.msk [vmem:[%s201 + $0x58] sm:$0xff] %vm502, %v501
      %p515 = scmp.lt.s32.totalorder %s18, 1
      %s516 = scalar_select %p515, %s18, 1
      %p517 = scmp.lt.s32.totalorder %s19, 0
      %s518 = scalar_select %p517, %s19, 0
      %s519 = smul.addr %s516, 12
      %s520 = sadd.s32 %s518, %s519
      %s521 = smul.addr %s520, 8
      %s522 = scalar_lea.vmem %s3, %s521
      // Predicated region
      $region33: #{multiscale_cnn_module2.1} parent=31 // pred_check
        %p523 = pneg %p116
      $region34: #{multiscale_cnn_module2.1} parent=31 // pred_check_branch
        %525 = sbr.rel (%p523) target = $region36
      $region35: #{multiscale_cnn_module2.1} parent=31 // pred_region
        _
      $region36: #{multiscale_cnn_module2.1} parent=31 // pred_fallthru
        _
    $region32: #{multiscale_cnn_module2.1} parent=5 // pred_fallthru
      _
    %p526 = scmp.le.s32.totalorder 2, %s9
    // Predicated region
    $region37: #{multiscale_cnn_module2.1} parent=5 // pred_check
      %p527 = pneg %p526
    $region38: #{multiscale_cnn_module2.1} parent=5 // pred_check_branch
      %529 = sbr.rel (%p527) target = $region40
    $region39: #{multiscale_cnn_module2.1} parent=5 // pred_region
      %s530 = ssub.s32 %s9, 2
      // Predicated region
      $region41: #{multiscale_cnn_module2.1} parent=39 // pred_check
        %p531 = pneg %p122
      $region42: #{multiscale_cnn_module2.1} parent=39 // pred_check_branch
        %533 = sbr.rel (%p531) target = $region44
      $region43: #{multiscale_cnn_module2.1} parent=39 // pred_region
        %p534 = scmp.lt.s32.totalorder %s20, 1
        %s535 = scalar_select %p534, %s20, 1
        %p536 = scmp.lt.s32.totalorder %s21, 0
        %s537 = scalar_select %p536, %s21, 0
        %s538 = smul.addr %s535, 12
        %s539 = sadd.s32 %s537, %s538
        %s540 = smul.addr %s539, 8
        %s541 = scalar_lea.vmem %s3, %s540
      $region44: #{multiscale_cnn_module2.1} parent=39 // pred_fallthru
        _
    $region40: #{multiscale_cnn_module2.1} parent=5 // pred_fallthru
      _
  $region6: #{multiscale_cnn_module2.1} parent=0 // loop_footer
    %s13 = sadd.s32 1, %s9
  $region7: #{multiscale_cnn_module2.1} parent=0 // loop_footer_branch
    %8 = sbr.rel target = $region3
  $region8: #{multiscale_cnn_module2.1} parent=0 // loop_exit
    _

</llo_original>
